<compile_context>
chip_gen: v5e
topology: v5e:2x2
jax: 0.10.0
libtpu: 0.0.40
codegen_flags: <defaults>
</compile_context>

<pallas_src>
import functools

import jax
import jax.numpy as jnp
from jax.experimental import pallas as pl
from jax.experimental.pallas import tpu as pltpu


# ----------------------------------------------------------------------------
# Constants / small helpers
# ----------------------------------------------------------------------------
_ROW_TILE = 512          # fallback: sublane-axis rows per block (multiple of 8)
_LANE_TILE = 512         # fallback: lane-axis elements per block (multiple of 128)
_ACC_LANES = 128         # fallback: width of the per-row partial-sum accumulator

_FUSED_VMEM_BUDGET = 24 * 1024 * 1024   # per-image working-set budget (v7x-safe)
_FUSED_VMEM_LIMIT = 28 * 1024 * 1024    # scoped-VMEM limit for the fused call


def _round_up(n, m):
    return ((n + m - 1) // m) * m


def _vmem_tile_bytes(rows, cols, dtype):
    """VMEM footprint of a (rows, cols) tile after (sublane, lane) padding."""
    item = jnp.dtype(dtype).itemsize
    sublane_pack = max(8, 32 // item) if item <= 4 else 8   # 8 f32 / 16 bf16 / 32 i8
    return _round_up(max(rows, 1), sublane_pack) * _round_up(max(cols, 1), 128) * item


def _divisor_tile(dim, unit, cap):
    """Largest tile <= cap, multiple of `unit`, dividing `dim`; the full dim if
    dim <= cap; None (=> wrapper pads) if only tiny divisors exist."""
    if dim <= cap:
        return dim
    t = (cap // unit) * unit
    floor = max(unit, cap // 2)          # don't accept narrow tiles; pad instead
    while t >= floor:
        if dim % t == 0:
            return t
        t -= unit
    return None


# ----------------------------------------------------------------------------
# PRIMARY PATH: fully fused SE kernel (one image per grid step)
# ----------------------------------------------------------------------------
def _fused_se_kernel(x_ref, w1_ref, w2_ref, o_ref, *, inv_hw):
    """squeeze + excite + scale for one image; x is read from HBM exactly once."""
    x = x_ref[0]                                           # (C, HW), input dtype

    # --- squeeze: f32 mean over the spatial (lane) axis ----------------------
    pooled = jnp.sum(x.astype(jnp.float32), axis=-1, keepdims=True) * inv_hw  # (C, 1)

    # --- excite: fc1 -> swish -> fc2 -> sigmoid (MXU, weights stay native) ---
    w1 = w1_ref[...]                                       # (R, C) = fc1.weight
    w2 = w2_ref[...]                                       # (C, R) = fc2.weight
    h = jnp.dot(w1, pooled.astype(w1.dtype),
                preferred_element_type=jnp.float32)        # (R, 1)
    h = h * jax.nn.sigmoid(h)                              # swish
    s = jnp.dot(w2, h.astype(w2.dtype),
                preferred_element_type=jnp.float32)        # (C, 1)
    s = jax.nn.sigmoid(s)

    # --- scale: broadcast multiply in the input dtype -------------------------
    o_ref[0] = x * s.astype(x.dtype)


def _se_fused(x3, w1, w2):
    B, C, HW = x3.shape
    R = w1.shape[0]
    kernel = functools.partial(_fused_se_kernel, inv_hw=float(1.0 / HW))
    return pl.pallas_call(
        kernel,
        out_shape=jax.ShapeDtypeStruct((B, C, HW), x3.dtype),
        grid_spec=pltpu.PrefetchScalarGridSpec(
            num_scalar_prefetch=0,
            grid=(B,),
            in_specs=[
                pl.BlockSpec((1, C, HW), lambda b: (b, 0, 0)),  # one image slab
                pl.BlockSpec((R, C), lambda b: (0, 0)),         # fc1.weight (resident)
                pl.BlockSpec((C, R), lambda b: (0, 0)),         # fc2.weight (resident)
            ],
            out_specs=pl.BlockSpec((1, C, HW), lambda b: (b, 0, 0)),
        ),
        compiler_params=pltpu.CompilerParams(
            dimension_semantics=("parallel",),   # images shard across TCs (v7x)
            vmem_limit_bytes=_FUSED_VMEM_LIMIT),
    )(x3, w1, w2)


# ----------------------------------------------------------------------------
# FALLBACK PATH (per-image slab too large for VMEM): 3-pass tiled pipeline
# ----------------------------------------------------------------------------
def _squeeze_kernel(x_ref, pooled_ref, acc_ref, *, inv_hw, n_chunks):
    k = pl.program_id(1)

    @pl.when(k == 0)
    def _():
        acc_ref[...] = jnp.zeros_like(acc_ref)

    x = x_ref[...].astype(jnp.float32)                     # (tr, ts)
    if n_chunks > 0:
        # Lane-chunked accumulation: VPU adds only in the hot loop.
        partial = x[:, 0:_ACC_LANES]
        for j in range(1, n_chunks):
            partial = partial + x[:, j * _ACC_LANES:(j + 1) * _ACC_LANES]
        acc_ref[...] += partial                            # (tr, 128)
    else:
        # Narrow lane tile (hw < 128 or non-128-multiple single block).
        acc_ref[...] += jnp.sum(x, axis=-1, keepdims=True)  # (tr, 1)

    @pl.when(k == pl.num_programs(1) - 1)
    def _():
        # The single cross-lane (XLU) reduce happens only once, here.
        pooled_ref[...] = jnp.sum(acc_ref[...], axis=-1, keepdims=True) * inv_hw


def _squeeze(x2d, tr, ts, true_hw):
    rows, hw = x2d.shape                                   # possibly zero-padded
    n_chunks = ts // _ACC_LANES if (ts % _ACC_LANES == 0) else 0
    acc_w = _ACC_LANES if n_chunks else 1
    kernel = functools.partial(_squeeze_kernel,
                               inv_hw=float(1.0 / true_hw), n_chunks=n_chunks)
    return pl.pallas_call(
        kernel,
        out_shape=jax.ShapeDtypeStruct((rows, 1), jnp.float32),
        grid_spec=pltpu.PrefetchScalarGridSpec(
            num_scalar_prefetch=0,
            grid=(rows // tr, hw // ts),
            in_specs=[pl.BlockSpec((tr, ts), lambda i, k: (i, k))],
            out_specs=pl.BlockSpec((tr, 1), lambda i, k: (i, 0)),
            scratch_shapes=[pltpu.VMEM((tr, acc_w), jnp.float32)],
        ),
        compiler_params=pltpu.CompilerParams(
            dimension_semantics=("parallel", "arbitrary")),
    )(x2d)


def _excite(pooled, w1, w2):
    """Tiny MLP (a few hundred KFLOPs): plain JAX — a dedicated pallas_call is
    pure launch/DMA overhead at these sizes (per the perf review)."""
    h = jnp.dot(pooled.astype(w1.dtype), w1.T, preferred_element_type=jnp.float32)
    h = h * jax.nn.sigmoid(h)
    s = jnp.dot(h.astype(w2.dtype), w2.T, preferred_element_type=jnp.float32)
    return jax.nn.sigmoid(s)


def _scale_kernel(x_ref, s_ref, o_ref):
    x = x_ref[...]
    # Multiply in the input dtype (bf16 stays bf16 on v6e/v7x VALUs).
    o_ref[...] = x * s_ref[...].astype(x.dtype)


def _scale(x2d, scale_col, tr, ts):
    rows, hw = x2d.shape
    return pl.pallas_call(
        _scale_kernel,
        out_shape=jax.ShapeDtypeStruct((rows, hw), x2d.dtype),
        grid_spec=pltpu.PrefetchScalarGridSpec(
            num_scalar_prefetch=0,
            grid=(rows // tr, hw // ts),
            in_specs=[
                pl.BlockSpec((tr, ts), lambda i, j: (i, j)),
                pl.BlockSpec((tr, 1), lambda i, j: (i, 0)),
            ],
            out_specs=pl.BlockSpec((tr, ts), lambda i, j: (i, j)),
        ),
        compiler_params=pltpu.CompilerParams(
            dimension_semantics=("parallel", "parallel")),
    )(x2d, scale_col)


def _se_three_pass(x2d, w1, w2, B, C):
    rows, hw = x2d.shape

    tr = _divisor_tile(rows, 8, _ROW_TILE)
    ts = _divisor_tile(hw, 128, _LANE_TILE)
    pad_r = 0 if tr is not None else _round_up(rows, _ROW_TILE) - rows
    pad_c = 0 if ts is not None else _round_up(hw, _LANE_TILE) - hw
    tr = tr if tr is not None else _ROW_TILE
    ts = ts if ts is not None else _LANE_TILE

    if pad_r or pad_c:
        # Awkward shapes only: zero-pad up to the tile grid.  Zero lanes do not
        # perturb the pooled sum; the padded region is sliced away at the end.
        x2d_t = jnp.pad(x2d, ((0, pad_r), (0, pad_c)))
    else:
        x2d_t = x2d

    pooled = _squeeze(x2d_t, tr, ts, hw)[:rows]                 # (B*C, 1) f32
    scale = _excite(pooled.reshape(B, C), w1, w2)               # (B, C)   f32
    scale_col = scale.reshape(rows, 1)
    if pad_r:
        scale_col = jnp.pad(scale_col, ((0, pad_r), (0, 0)))
    out = _scale(x2d_t, scale_col, tr, ts)
    if pad_r or pad_c:
        out = out[:rows, :hw]
    return out


# ----------------------------------------------------------------------------
# SE forward (Pallas)
# ----------------------------------------------------------------------------
def se_forward(x, fc1_weight, fc2_weight, *, force_three_pass=False):
    """SE.forward(x): x (B, C, H, W); fc1_weight (R, C); fc2_weight (C, R)."""
    B, C, H, W = x.shape
    HW = H * W
    R = fc1_weight.shape[0]

    # Fused-path per-image VMEM working set: double-buffered in/out slabs,
    # resident weights, headroom for in-kernel temporaries.
    slab = _vmem_tile_bytes(C, HW, x.dtype)
    weights = (_vmem_tile_bytes(R, C, fc1_weight.dtype)
               + _vmem_tile_bytes(C, R, fc2_weight.dtype))
    fused_bytes = 6 * slab + 4 * weights + (1 << 20)

    if (not force_three_pass) and fused_bytes <= _FUSED_VMEM_BUDGET:
        out3 = _se_fused(x.reshape(B, C, HW), fc1_weight, fc2_weight)
        return out3.reshape(B, C, H, W)

    out2d = _se_three_pass(x.reshape(B * C, HW), fc1_weight, fc2_weight, B, C)
    return out2d.reshape(B, C, H, W)


# ----------------------------------------------------------------------------
# Pure-JAX reference for verification
# ----------------------------------------------------------------------------
def se_reference(x, fc1_weight, fc2_weight):
    y = jnp.mean(x.astype(jnp.float32), axis=(2, 3))                 # (B, C)
    h = y @ fc1_weight.astype(jnp.float32).T                         # (B, R)
    h = h * jax.nn.sigmoid(h)                                        # swish
    s = jax.nn.sigmoid(h @ fc2_weight.astype(jnp.float32).T)         # (B, C)
    return (x.astype(jnp.float32) * s[:, :, None, None]).astype(x.dtype)


if __name__ == "__main__":
    root = jax.random.PRNGKey(0)

    def run_case(key, B, C, H, W, reduction_rate, force_three_pass=False):
        R = max(1, C // reduction_rate)
        kx, k1, k2 = jax.random.split(key, 3)
        x = jax.random.normal(kx, (B, C, H, W), dtype=jnp.float32)
        w1 = jax.random.normal(k1, (R, C), dtype=jnp.float32) / jnp.sqrt(float(C))
        w2 = jax.random.normal(k2, (C, R), dtype=jnp.float32) / jnp.sqrt(float(R))
        out = jax.block_until_ready(
            se_forward(x, w1, w2, force_three_pass=force_three_pass))
        ref = se_reference(x, w1, w2)
        assert out.shape == x.shape and out.dtype == x.dtype
        err = float(jnp.max(jnp.abs(out.astype(jnp.float32) - ref.astype(jnp.float32))))
        # Tolerance covers MXU-vs-XLA default matmul precision differences.
        assert jnp.allclose(out, ref, atol=1e-3, rtol=1e-3), err

    keys = jax.random.split(root, 4)
    # Fused single-read path (the common case: whole image slab fits VMEM).
    run_case(keys[0], 2, 32, 16, 16, 16)          # spec-consistent small shape
    run_case(keys[1], 3, 20, 17, 23, 4)           # awkward dims, still fused
    # 3-pass fallback (forced here; normally only for very large C*H*W slabs):
    run_case(keys[2], 5, 112, 25, 26, 16,         # divisor row tiles + padded lanes
             force_three_pass=True)
    run_case(keys[3], 2, 40, 8, 8, 16,            # small spatial extent (hw < 128)
             force_three_pass=True)

    print("KERNEL_OK")
</pallas_src>

<mosaic_0001>
module attributes {stable_mosaic.version = 11 : i64} {
  func.func @_fused_se_kernel(%arg0: i32, %arg1: memref<1x32x256xf32, #tpu.memory_space<vmem>>, %arg2: memref<2x32xf32, #tpu.memory_space<vmem>>, %arg3: memref<32x2xf32, #tpu.memory_space<vmem>>, %arg4: memref<1x32x256xf32, #tpu.memory_space<vmem>>) attributes {dimension_semantics = [#tpu.dimension_semantics<parallel>], iteration_bounds = array<i64: 2>, scalar_prefetch = 0 : i64, scratch_operands = 0 : i64, tpu.core_type = #tpu.core_type<tc>, window_params = [{transform_indices = @transform_0, window_bounds = array<i64: 1, 32, 256>}, {pipeline_mode = #tpu.pipeline_mode<synchronous>, transform_indices = @transform_1, window_bounds = array<i64: 2, 32>}, {pipeline_mode = #tpu.pipeline_mode<synchronous>, transform_indices = @transform_2, window_bounds = array<i64: 32, 2>}, {transform_indices = @transform_3, window_bounds = array<i64: 1, 32, 256>}]} {
    %c0 = arith.constant 0 : index
    %c0_0 = arith.constant 0 : index
    %c0_1 = arith.constant 0 : index
    %0 = vector.load %arg1[%c0, %c0_0, %c0_1] : memref<1x32x256xf32, #tpu.memory_space<vmem>>, vector<1x32x256xf32>
    %1 = vector.shape_cast %0 : vector<1x32x256xf32> to vector<32x256xf32>
    %cst = arith.constant dense<0.000000e+00> : vector<32xf32>
    %2 = vector.multi_reduction <add>, %1, %cst [1] : vector<32x256xf32> to vector<32xf32>
    %3 = vector.shape_cast %2 : vector<32xf32> to vector<32x1xf32>
    %cst_2 = arith.constant 3.906250e-03 : f32
    %4 = vector.broadcast %cst_2 : f32 to vector<32x1xf32>
    %5 = arith.mulf %3, %4 : vector<32x1xf32>
    %c0_3 = arith.constant 0 : index
    %c0_4 = arith.constant 0 : index
    %6 = vector.load %arg2[%c0_3, %c0_4] : memref<2x32xf32, #tpu.memory_space<vmem>>, vector<2x32xf32>
    %c0_5 = arith.constant 0 : index
    %c0_6 = arith.constant 0 : index
    %7 = vector.load %arg3[%c0_5, %c0_6] : memref<32x2xf32, #tpu.memory_space<vmem>>, vector<32x2xf32>
    %cst_7 = arith.constant dense<0.000000e+00> : vector<2x1xf32>
    %8 = tpu.matmul %6, %5, %cst_7 {dimension_numbers = #tpu.dot_dimension_numbers<[1], [0], [0], [1], [0, 0, 1, 1], [], []>} : vector<2x32xf32>, vector<32x1xf32>, vector<2x1xf32> -> vector<2x1xf32>
    %9 = arith.negf %8 : vector<2x1xf32>
    %10 = math.exp %9 : vector<2x1xf32>
    %cst_8 = arith.constant 1.000000e+00 : f32
    %11 = vector.broadcast %cst_8 : f32 to vector<2x1xf32>
    %12 = arith.addf %11, %10 : vector<2x1xf32>
    %13 = arith.divf %11, %12 : vector<2x1xf32>
    %14 = arith.mulf %8, %13 : vector<2x1xf32>
    %cst_9 = arith.constant dense<0.000000e+00> : vector<32x1xf32>
    %15 = tpu.matmul %7, %14, %cst_9 {dimension_numbers = #tpu.dot_dimension_numbers<[1], [0], [0], [1], [0, 0, 1, 1], [], []>} : vector<32x2xf32>, vector<2x1xf32>, vector<32x1xf32> -> vector<32x1xf32>
    %16 = arith.negf %15 : vector<32x1xf32>
    %17 = math.exp %16 : vector<32x1xf32>
    %cst_10 = arith.constant 1.000000e+00 : f32
    %18 = vector.broadcast %cst_10 : f32 to vector<32x1xf32>
    %19 = arith.addf %18, %17 : vector<32x1xf32>
    %20 = arith.divf %18, %19 : vector<32x1xf32>
    %21 = vector.broadcast %20 : vector<32x1xf32> to vector<32x256xf32>
    %22 = arith.mulf %1, %21 : vector<32x256xf32>
    %c0_11 = arith.constant 0 : index
    %c0_12 = arith.constant 0 : index
    %c0_13 = arith.constant 0 : index
    %23 = vector.load %arg4[%c0_11, %c0_12, %c0_13] : memref<1x32x256xf32, #tpu.memory_space<vmem>>, vector<1x32x256xf32>
    %24 = vector.shape_cast %23 : vector<1x32x256xf32> to vector<32x256xf32>
    %25 = vector.shape_cast %22 : vector<32x256xf32> to vector<1x32x256xf32>
    tpu.vector_store %arg4[%c0_11, %c0_12, %c0_13], %25 {strides = array<i32>} : memref<1x32x256xf32, #tpu.memory_space<vmem>>, vector<1x32x256xf32>,
    return
  }
  func.func @transform_0(%arg0: i32) -> (i32, i32, i32) {
    %c0_i32 = arith.constant 0 : i32
    %c0_i32_0 = arith.constant 0 : i32
    %c0_i32_1 = arith.constant 0 : i32
    return %arg0, %c0_i32, %c0_i32_0 : i32, i32, i32
  }
  func.func @transform_1(%arg0: i32) -> (i32, i32) {
    %c0_i32 = arith.constant 0 : i32
    %c0_i32_0 = arith.constant 0 : i32
    %c0_i32_1 = arith.constant 0 : i32
    return %c0_i32, %c0_i32_0 : i32, i32
  }
  func.func @transform_2(%arg0: i32) -> (i32, i32) {
    %c0_i32 = arith.constant 0 : i32
    %c0_i32_0 = arith.constant 0 : i32
    %c0_i32_1 = arith.constant 0 : i32
    return %c0_i32, %c0_i32_0 : i32, i32
  }
  func.func @transform_3(%arg0: i32) -> (i32, i32, i32) {
    %c0_i32 = arith.constant 0 : i32
    %c0_i32_0 = arith.constant 0 : i32
    %c0_i32_1 = arith.constant 0 : i32
    return %arg0, %c0_i32, %c0_i32_0 : i32, i32, i32
  }
}

</mosaic_0001>

<llo_original>
// kernel: tpu_custom_call.1
$region0: #{tpu_custom_call.1}
  #allocation0 [shape = 'u32[]', space=smem, size = 0x4, offset = 0x4, fixed_abs, tag = 'smem constant byte address 0x4 - core index']
  #allocation1 [shape = 'u32[72,128]{1,0:T(1,128)}', space=vmem, size = 0x9000, scoped, tag = 'internal scratch']
  %s0 = inlined_call_operand.hbm [shape: f32[2,32,256], index: 0, kind: input, shape index: {}]
  %s1 = inlined_call_operand.vmem [shape: f32[2,32], index: 1, kind: input, shape index: {}]
  %s2 = inlined_call_operand.vmem [shape: f32[32,2], index: 2, kind: input, shape index: {}]
  %s3 = inlined_call_operand.hbm [shape: f32[2,32,256], index: 3, kind: output, shape index: {}]
  %s4 = sld [smem:[#allocation0]]
  $region49: #{tpu_custom_call.1} parent=0
    _
  %s6 = ssub.s32 1, %s4
  %s7 = scalar_select 0, %s6, %s4
  $region1: #{tpu_custom_call.1} parent=0
    #allocation2 [shape = 'u8[65536]{0}', space=vmem, size = 0x10000, scoped, tag = 'input window, operand 0']
    #allocation3 [shape = 's32[2]{0}', space=sflag, size = 0x8, scoped, tag = 'scoped memory for tpu_custom_call.1']
    #allocation4 [shape = 's32[2]{0}', space=sflag, size = 0x8, scoped, tag = 'scoped memory for tpu_custom_call.1']
    #allocation5 [shape = 'u8[65536]{0}', space=vmem, size = 0x10000, scoped, tag = 'output window, operand 0']
    %8 = vsyncpa [#allocation3], 0
    %s9 = scalar_lea.sflag [#allocation3], 1
    %10 = vsyncpa %s9, 0
    %11 = vsyncpa [#allocation4], 0
    %s12 = scalar_lea.sflag [#allocation4], 1
    %13 = vsyncpa %s12, 0
    loop: start=0, step=1, limit=4
    $region2: #{tpu_custom_call.1} parent=1 // loop_pre_header
      _
    $region3: #{tpu_custom_call.1} parent=1 // loop_header
      %s15 = sphi 0, %s19
      %p16 = scmp.ge.s32.totalorder %s15, 4
      %s25 = sphi 0, %s27
      %s28 = sphi 0, %s25
      %s29 = sphi 0, %s28
      %s45 = sphi 0, %s29
      %s49 = sphi 0, %s49
      %s51 = sphi 0, %s49
      %s52 = sphi 0, %s51
      %s66 = sphi 0, %s52
      %s70 = sphi 0, %s70
      %s72 = sphi 0, %s70
      %s73 = sphi 0, %s72
      %s87 = sphi 0, %s73
      %s93 = sphi 0, %s95
      %s96 = sphi 0, %s93
      %s97 = sphi 0, %s96
      %s113 = sphi 0, %s97
    $region4: #{tpu_custom_call.1} parent=1 // loop_header_branch
      %18 = sbr.rel (%p16) target = $region8
    $region5: #{tpu_custom_call.1} parent=1 // loop_body
      %s20 = ssub.s32 %s15, 1
      %s21 = ssub.s32 %s15, 2
      %s22 = sadd.s32 %s15, 1
      %s23 = ssub.s32 %s15, %s22
      %p24 = scmp.eq.s32.totalorder %s23, 0
      %s26 = sadd.s32 %s25, 1
      %s27 = scalar_select %p24, %s25, %s26
      %p30 = pneg %p24
      %p31 = scmp.eq.s32.totalorder %s15, 1
      %p32 = por %p30, %p31
      %p33 = scmp.ne.s32.totalorder %s25, %s28
      %p34 = scmp.eq.s32.totalorder %s15, 0
      %p35 = por %p33, %p34
      %p36 = scmp.ne.s32.totalorder %s25, %s28
      %p37 = scmp.eq.s32.totalorder %s20, 1
      %p38 = por %p36, %p37
      %p39 = scmp.ne.s32.totalorder %s28, %s29
      %p40 = scmp.eq.s32.totalorder %s20, 0
      %p41 = por %p39, %p40
      %p42 = scmp.ne.s32.totalorder %s28, %s29
      %p43 = scmp.eq.s32.totalorder %s21, 1
      %p44 = por %p42, %p43
      %p46 = scmp.ne.s32.totalorder %s29, %s45
      %p47 = scmp.eq.s32.totalorder %s21, 0
      %p48 = por %p46, %p47
      %s50 = sadd.s32 %s49, 1
      %p53 = scmp.eq.s32.totalorder %s15, 1
      %p54 = scmp.ne.s32.totalorder %s49, %s51
      %p55 = scmp.eq.s32.totalorder %s15, 0
      %p56 = por %p54, %p55
      %p57 = scmp.ne.s32.totalorder %s49, %s51
      %p58 = scmp.eq.s32.totalorder %s20, 1
      %p59 = por %p57, %p58
      %p60 = scmp.ne.s32.totalorder %s51, %s52
      %p61 = scmp.eq.s32.totalorder %s20, 0
      %p62 = por %p60, %p61
      %p63 = scmp.ne.s32.totalorder %s51, %s52
      %p64 = scmp.eq.s32.totalorder %s21, 1
      %p65 = por %p63, %p64
      %p67 = scmp.ne.s32.totalorder %s52, %s66
      %p68 = scmp.eq.s32.totalorder %s21, 0
      %p69 = por %p67, %p68
      %s71 = sadd.s32 %s70, 1
      %p74 = scmp.eq.s32.totalorder %s15, 1
      %p75 = scmp.ne.s32.totalorder %s70, %s72
      %p76 = scmp.eq.s32.totalorder %s15, 0
      %p77 = por %p75, %p76
      %p78 = scmp.ne.s32.totalorder %s70, %s72
      %p79 = scmp.eq.s32.totalorder %s20, 1
      %p80 = por %p78, %p79
      %p81 = scmp.ne.s32.totalorder %s72, %s73
      %p82 = scmp.eq.s32.totalorder %s20, 0
      %p83 = por %p81, %p82
      %p84 = scmp.ne.s32.totalorder %s72, %s73
      %p85 = scmp.eq.s32.totalorder %s21, 1
      %p86 = por %p84, %p85
      %p88 = scmp.ne.s32.totalorder %s73, %s87
      %p89 = scmp.eq.s32.totalorder %s21, 0
      %p90 = por %p88, %p89
      %s91 = ssub.s32 %s15, %s22
      %p92 = scmp.eq.s32.totalorder %s91, 0
      %s94 = sadd.s32 %s93, 1
      %s95 = scalar_select %p92, %s93, %s94
      %p98 = pneg %p92
      %p99 = scmp.eq.s32.totalorder %s15, 1
      %p100 = por %p98, %p99
      %p101 = scmp.ne.s32.totalorder %s93, %s96
      %p102 = scmp.eq.s32.totalorder %s15, 0
      %p103 = por %p101, %p102
      %p104 = scmp.ne.s32.totalorder %s93, %s96
      %p105 = scmp.eq.s32.totalorder %s20, 1
      %p106 = por %p104, %p105
      %p107 = scmp.ne.s32.totalorder %s96, %s97
      %p108 = scmp.eq.s32.totalorder %s20, 0
      %p109 = por %p107, %p108
      %p110 = scmp.ne.s32.totalorder %s96, %s97
      %p111 = scmp.eq.s32.totalorder %s21, 1
      %p112 = por %p110, %p111
      %p114 = scmp.ne.s32.totalorder %s97, %s113
      %p115 = scmp.eq.s32.totalorder %s21, 0
      %p116 = por %p114, %p115
      %p117 = scmp.le.s32.totalorder 1, %s15
      %p118 = scmp.lt.s32.totalorder %s15, 3
      %p119 = pnand %p117, %p118
      %p120 = pneg %p119
      // Predicated region
      $region9: #{tpu_custom_call.1} parent=5 // pred_check
        _
      $region10: #{tpu_custom_call.1} parent=5 // pred_check_branch
        %122 = sbr.rel (%p119) target = $region12
      $region11: #{tpu_custom_call.1} parent=5 // pred_region
        %s123 = ssub.s32 %s15, 1
        // Predicated region
        $region13: #{tpu_custom_call.1} parent=11 // pred_check
          %p124 = pneg %p62
        $region14: #{tpu_custom_call.1} parent=11 // pred_check_branch
          %126 = sbr.rel (%p124) target = $region16
        $region15: #{tpu_custom_call.1} parent=11 // pred_region
          _
        $region16: #{tpu_custom_call.1} parent=11 // pred_fallthru
          _
        // Predicated region
        $region17: #{tpu_custom_call.1} parent=11 // pred_check
          %p127 = pneg %p83
        $region18: #{tpu_custom_call.1} parent=11 // pred_check_branch
          %129 = sbr.rel (%p127) target = $region20
        $region19: #{tpu_custom_call.1} parent=11 // pred_region
          _
        $region20: #{tpu_custom_call.1} parent=11 // pred_fallthru
          _
      $region12: #{tpu_custom_call.1} parent=5 // pred_fallthru
        _
      %p130 = scmp.lt.s32.totalorder %s15, 2
      // Predicated region
      $region21: #{tpu_custom_call.1} parent=5 // pred_check
        %p131 = pneg %p130
      $region22: #{tpu_custom_call.1} parent=5 // pred_check_branch
        %133 = sbr.rel (%p131) target = $region24
      $region23: #{tpu_custom_call.1} parent=5 // pred_region
        // Predicated region
        $region25: #{tpu_custom_call.1} parent=23 // pred_check
          %p134 = pneg %p35
        $region26: #{tpu_custom_call.1} parent=23 // pred_check_branch
          %136 = sbr.rel (%p134) target = $region28
        $region27: #{tpu_custom_call.1} parent=23 // pred_region
          %s137 = sand.u32 %s25, 1
          %s138 = scalar_lea.sflag [#allocation3], %s137
          %s139 = sand.u32 %s25, 1
          %s140 = smul.addr %s139, 64
          %s141 = scalar_lea.vmem [#allocation2], %s140
          %143 = vsyncadd %s138, 0
          %s144 = smul.addr %s15, 8
          %s145 = smul.addr %s144, 8
          %s146 = scalar_lea.hbm %s0, %s145
          %s147 = sshll.u32 %s146, 4
          %s148 = int_to_ptr.hbm [resolvable:$true] %s147
          %s149 = sshll.u32 %s141, 4
          %s150 = int_to_ptr.vmem [resolvable:$true] %s149
          %155 = dma.hbm_to_vmem [thread:$0]  %s148, 1024, %s150, %s138, 256, 256, 16
        $region28: #{tpu_custom_call.1} parent=23 // pred_fallthru
          _
      $region24: #{tpu_custom_call.1} parent=5 // pred_fallthru
        _
      %p156 = scmp.le.s32.totalorder 1, %s15
      %p157 = scmp.lt.s32.totalorder %s15, 3
      %p158 = pnand %p156, %p157
      %p159 = pneg %p158
      // Predicated region
      $region29: #{tpu_custom_call.1} parent=5 // pred_check
        _
      $region30: #{tpu_custom_call.1} parent=5 // pred_check_branch
        %161 = sbr.rel (%p158) target = $region32
      $region31: #{tpu_custom_call.1} parent=5 // pred_region
        %s162 = ssub.s32 %s15, 1
        %s163 = sand.u32 %s28, 1
        %s164 = scalar_lea.sflag [#allocation3], %s163
        %s165 = sand.u32 %s28, 1
        %s166 = smul.addr %s165, 64
        %s167 = scalar_lea.vmem [#allocation2], %s166
        // Predicated region
        $region33: #{tpu_custom_call.1} parent=31 // pred_check
          %p168 = pneg %p41
        $region34: #{tpu_custom_call.1} parent=31 // pred_check_branch
          %170 = sbr.rel (%p168) target = $region36
        $region35: #{tpu_custom_call.1} parent=31 // pred_region
          %172 = dma.done %s164, 1024
        $region36: #{tpu_custom_call.1} parent=31 // pred_fallthru
          _
        %s173 = sand.u32 %s28, 1
        %s174 = scalar_lea.sflag [#allocation3], %s173
        %s175 = sand.u32 %s28, 1
        %s176 = smul.addr %s175, 64
        %s177 = scalar_lea.vmem [#allocation2], %s176
        %p178 = pneg %p41
        %p179 = pneg %p38
        %p180 = pneg %p62
        %p181 = pneg %p59
        %p182 = pneg %p83
        %p183 = pneg %p80
        %p184 = pneg %p109
        %p185 = pneg %p106
        %s186 = sand.u32 %s96, 1
        %s187 = scalar_lea.sflag [#allocation4], %s186
        %s188 = sand.u32 %s96, 1
        %s189 = smul.addr %s188, 64
        %s190 = scalar_lea.vmem [#allocation5], %s189
        %v191 = vld [vmem:[%s167] sm:$0xff]
        %v192 = vld [vmem:[%s167 + $0x8] sm:$0xff]
        %v193 = vld [vmem:[%s167 + $0x10] sm:$0xff]
        %v194 = vld [vmem:[%s167 + $0x18] sm:$0xff]
        %v195 = vld [vmem:[%s167 + $0x20] sm:$0xff]
        %v196 = vld [vmem:[%s167 + $0x28] sm:$0xff]
        %v197 = vld [vmem:[%s167 + $0x30] sm:$0xff]
        %v198 = vld [vmem:[%s167 + $0x38] sm:$0xff]
        %v199 = vadd.f32 %v191, %v192
        %200 = vadd.xlane.f32.xlu0 %v199
        %v201 = vpop.xlane.xlu0 %200
        %v202 = vadd.f32 %v193, %v194
        %203 = vadd.xlane.f32.xlu0 %v202
        %v204 = vpop.xlane.xlu0 %203
        %v205 = vadd.f32 %v195, %v196
        %206 = vadd.xlane.f32.xlu0 %v205
        %v207 = vpop.xlane.xlu0 %206
        %v208 = vadd.f32 %v197, %v198
        %209 = vadd.xlane.f32.xlu0 %v208
        %v210 = vpop.xlane.xlu0 %209
        %v211 = vmul.f32 %v201, 0.00390625
        %v212 = vmul.f32 %v204, 0.00390625
        %v213 = vmul.f32 %v207, 0.00390625
        %v214 = vmul.f32 %v210, 0.00390625
        %v215 = vld [vmem:[%s1] sm:$0x3]
        %v216 = vld [vmem:[%s2] sm:$0xff]
        %v217 = vld [vmem:[%s2 + $0x8] sm:$0xff]
        %v218 = vld [vmem:[%s2 + $0x10] sm:$0xff]
        %v219 = vld [vmem:[%s2 + $0x18] sm:$0xff]
        %vm220 = vcmask 261120
        %v222 = vsel %vm220, %v215, 0
        %224 = vmatpush.msra.mxu0 0.0
        %225 = vmatpush.msra.mxu0 0.0
        %226 = vmatpush.msra.mxu0 0.0
        %227 = vmatpush.msra.mxu0 0.0
        %228 = vmatpush.msra.mxu0 0.0
        %229 = vmatpush.msra.mxu0 0.0
        %230 = vmatpush.msra.mxu0 0.0
        %231 = vmatpush.msra.mxu0 0.0
        %232 = vmatpush.msra.mxu0 0.0
        %233 = vmatpush.msra.mxu0 0.0
        %234 = vmatpush.msra.mxu0 0.0
        %235 = vmatpush.msra.mxu0 0.0
        %236 = vmatpush.msra.mxu0 %v214
        %237 = vmatpush.msra.mxu0 %v213
        %238 = vmatpush.msra.mxu0 %v212
        %239 = vmatpush.msra.mxu0 %v211
        %240 = vmatmul.f32.gmra.mxu0 %v222
        %v241 = vpop.f32.mrf.mxu0
        %v242 = vadd.f32 0.0, %v241
        %243 = vdwg.mxu0
        %v244 = vxor.u32 %v242, 2147483648
        %v245 = vmul.f32 %v244, 1.442695
        %v246 = vpow.pop %v245
        %v247 = vadd.f32 %v246, 1.0
        %v248 = vrcp.pop %v247
        %v249 = vmul.f32 %v247, %v248
        %v250 = vsub.f32 1.0, %v249
        %v251 = vmul.f32 %v248, %v250
        %v252 = vadd.f32 %v248, %v251
        %vm253 = vweird.f32 %v247
        %vm254 = vweird.f32 %v248
        %vm255 = vmor %vm253, %vm254
        %v256 = vsel %vm255, %v248, %v252
        %v257 = vand.u32 2147483647, %v247
        %vm258 = vcmp.eq.f32.partialorder %v257, 8.507059e+37
        %v259 = vand.u32 %v247, 2147483648
        %v260 = vor.u32 1.1754944e-38, %v259
        %v261 = vsel %vm258, %v260, %v256
        %v262 = vmul.f32 1.0, %v261
        %v263 = vmul.f32 %v242, %v262
        %vm264 = vcmask 15360
        %v266 = vsel %vm264, %v216, 0
        %v269 = vsel %vm264, %v217, 0
        %v272 = vsel %vm264, %v218, 0
        %v275 = vsel %vm264, %v219, 0
        %vm277 = vcmask 1041408
        %v279 = vsel %vm277, %v263, 0
        %281 = vmatpush.msra.mxu0 0.0
        %282 = vmatpush.msra.mxu0 0.0
        %283 = vmatpush.msra.mxu0 0.0
        %284 = vmatpush.msra.mxu0 0.0
        %285 = vmatpush.msra.mxu0 0.0
        %286 = vmatpush.msra.mxu0 0.0
        %287 = vmatpush.msra.mxu0 0.0
        %288 = vmatpush.msra.mxu0 0.0
        %289 = vmatpush.msra.mxu0 0.0
        %290 = vmatpush.msra.mxu0 0.0
        %291 = vmatpush.msra.mxu0 0.0
        %292 = vmatpush.msra.mxu0 0.0
        %293 = vmatpush.msra.mxu0 0.0
        %294 = vmatpush.msra.mxu0 0.0
        %295 = vmatpush.msra.mxu0 0.0
        %296 = vmatpush.msra.mxu0 %v279
        %297 = vmatmul.f32.gmra.mxu0 %v266
        %v298 = vpop.f32.mrf.mxu0
        %v299 = vadd.f32 0.0, %v298
        %300 = vmatmul.f32.gmra.mxu0 %v269
        %v301 = vpop.f32.mrf.mxu0
        %v302 = vadd.f32 0.0, %v301
        %303 = vmatmul.f32.gmra.mxu0 %v272
        %v304 = vpop.f32.mrf.mxu0
        %v305 = vadd.f32 0.0, %v304
        %306 = vmatmul.f32.gmra.mxu0 %v275
        %v307 = vpop.f32.mrf.mxu0
        %v308 = vadd.f32 0.0, %v307
        %309 = vdwg.mxu0
        %v310 = vxor.u32 %v299, 2147483648
        %v311 = vxor.u32 %v302, 2147483648
        %v312 = vxor.u32 %v305, 2147483648
        %v313 = vxor.u32 %v308, 2147483648
        %v314 = vmul.f32 %v310, 1.442695
        %v315 = vpow.pop %v314
        %v316 = vmul.f32 %v311, 1.442695
        %v317 = vpow.pop %v316
        %v318 = vmul.f32 %v312, 1.442695
        %v319 = vpow.pop %v318
        %v320 = vmul.f32 %v313, 1.442695
        %v321 = vpow.pop %v320
        %v322 = vadd.f32 %v315, 1.0
        %v323 = vadd.f32 %v317, 1.0
        %v324 = vadd.f32 %v319, 1.0
        %v325 = vadd.f32 %v321, 1.0
        %v326 = vrcp.pop %v322
        %v327 = vmul.f32 %v322, %v326
        %v328 = vsub.f32 1.0, %v327
        %v329 = vmul.f32 %v326, %v328
        %v330 = vadd.f32 %v326, %v329
        %vm331 = vweird.f32 %v322
        %vm332 = vweird.f32 %v326
        %vm333 = vmor %vm331, %vm332
        %v334 = vsel %vm333, %v326, %v330
        %v335 = vand.u32 2147483647, %v322
        %vm336 = vcmp.eq.f32.partialorder %v335, 8.507059e+37
        %v337 = vand.u32 %v322, 2147483648
        %v338 = vor.u32 1.1754944e-38, %v337
        %v339 = vsel %vm336, %v338, %v334
        %v340 = vmul.f32 1.0, %v339
        %v341 = vrcp.pop %v323
        %v342 = vmul.f32 %v323, %v341
        %v343 = vsub.f32 1.0, %v342
        %v344 = vmul.f32 %v341, %v343
        %v345 = vadd.f32 %v341, %v344
        %vm346 = vweird.f32 %v323
        %vm347 = vweird.f32 %v341
        %vm348 = vmor %vm346, %vm347
        %v349 = vsel %vm348, %v341, %v345
        %v350 = vand.u32 2147483647, %v323
        %vm351 = vcmp.eq.f32.partialorder %v350, 8.507059e+37
        %v352 = vand.u32 %v323, 2147483648
        %v353 = vor.u32 1.1754944e-38, %v352
        %v354 = vsel %vm351, %v353, %v349
        %v355 = vmul.f32 1.0, %v354
        %v356 = vrcp.pop %v324
        %v357 = vmul.f32 %v324, %v356
        %v358 = vsub.f32 1.0, %v357
        %v359 = vmul.f32 %v356, %v358
        %v360 = vadd.f32 %v356, %v359
        %vm361 = vweird.f32 %v324
        %vm362 = vweird.f32 %v356
        %vm363 = vmor %vm361, %vm362
        %v364 = vsel %vm363, %v356, %v360
        %v365 = vand.u32 2147483647, %v324
        %vm366 = vcmp.eq.f32.partialorder %v365, 8.507059e+37
        %v367 = vand.u32 %v324, 2147483648
        %v368 = vor.u32 1.1754944e-38, %v367
        %v369 = vsel %vm366, %v368, %v364
        %v370 = vmul.f32 1.0, %v369
        %v371 = vrcp.pop %v325
        %v372 = vmul.f32 %v325, %v371
        %v373 = vsub.f32 1.0, %v372
        %v374 = vmul.f32 %v371, %v373
        %v375 = vadd.f32 %v371, %v374
        %vm376 = vweird.f32 %v325
        %vm377 = vweird.f32 %v371
        %vm378 = vmor %vm376, %vm377
        %v379 = vsel %vm378, %v371, %v375
        %v380 = vand.u32 2147483647, %v325
        %vm381 = vcmp.eq.f32.partialorder %v380, 8.507059e+37
        %v382 = vand.u32 %v325, 2147483648
        %v383 = vor.u32 1.1754944e-38, %v382
        %v384 = vsel %vm381, %v383, %v379
        %v385 = vmul.f32 1.0, %v384
        %387 = vset.pattern.permute.xlu0 0
        %388 = vperm.xlu0 %387, %v340
        %v389 = vpop.permute.xlu0 %388
        %392 = vset.pattern.permute.xlu0 0
        %393 = vperm.xlu0 %392, %v355
        %v394 = vpop.permute.xlu0 %393
        %397 = vset.pattern.permute.xlu0 0
        %398 = vperm.xlu0 %397, %v370
        %v399 = vpop.permute.xlu0 %398
        %402 = vset.pattern.permute.xlu0 0
        %403 = vperm.xlu0 %402, %v385
        %v404 = vpop.permute.xlu0 %403
        %v406 = vmul.f32 %v191, %v389
        %v407 = vmul.f32 %v192, %v389
        %v408 = vmul.f32 %v193, %v394
        %v409 = vmul.f32 %v194, %v394
        %v410 = vmul.f32 %v195, %v399
        %v411 = vmul.f32 %v196, %v399
        %v412 = vmul.f32 %v197, %v404
        %v413 = vmul.f32 %v198, %v404
        %414 = vst [vmem:[%s190] sm:$0xff] %v406
        %415 = vst [vmem:[%s190 + $0x8] sm:$0xff] %v407
        %416 = vst [vmem:[%s190 + $0x10] sm:$0xff] %v408
        %417 = vst [vmem:[%s190 + $0x18] sm:$0xff] %v409
        %418 = vst [vmem:[%s190 + $0x20] sm:$0xff] %v410
        %419 = vst [vmem:[%s190 + $0x28] sm:$0xff] %v411
        %420 = vst [vmem:[%s190 + $0x30] sm:$0xff] %v412
        %421 = vst [vmem:[%s190 + $0x38] sm:$0xff] %v413
        %s422 = sand.u32 %s96, 1
        %s423 = scalar_lea.sflag [#allocation4], %s422
        %s424 = sand.u32 %s96, 1
        %s425 = smul.addr %s424, 64
        %s426 = scalar_lea.vmem [#allocation5], %s425
        // Predicated region
        $region37: #{tpu_custom_call.1} parent=31 // pred_check
          %p427 = pneg %p106
        $region38: #{tpu_custom_call.1} parent=31 // pred_check_branch
          %429 = sbr.rel (%p427) target = $region40
        $region39: #{tpu_custom_call.1} parent=31 // pred_region
          %431 = vsyncadd %s423, 0
          %s432 = smul.addr %s20, 8
          %s433 = smul.addr %s432, 8
          %s434 = scalar_lea.hbm %s3, %s433
          %s435 = sshll.u32 %s426, 4
          %s436 = int_to_ptr.vmem [resolvable:$true] %s435
          %s437 = sshll.u32 %s434, 4
          %s438 = int_to_ptr.hbm [resolvable:$true] %s437
          %443 = dma.vmem_to_hbm [thread:$0]  %s436, 1024, %s438, %s423, 256, 256, 16
        $region40: #{tpu_custom_call.1} parent=31 // pred_fallthru
          _
      $region32: #{tpu_custom_call.1} parent=5 // pred_fallthru
        _
      %p444 = scmp.le.s32.totalorder 2, %s15
      // Predicated region
      $region41: #{tpu_custom_call.1} parent=5 // pred_check
        %p445 = pneg %p444
      $region42: #{tpu_custom_call.1} parent=5 // pred_check_branch
        %447 = sbr.rel (%p445) target = $region44
      $region43: #{tpu_custom_call.1} parent=5 // pred_region
        %s448 = ssub.s32 %s15, 2
        // Predicated region
        $region45: #{tpu_custom_call.1} parent=43 // pred_check
          %p449 = pneg %p112
        $region46: #{tpu_custom_call.1} parent=43 // pred_check_branch
          %451 = sbr.rel (%p449) target = $region48
        $region47: #{tpu_custom_call.1} parent=43 // pred_region
          %s452 = sand.u32 %s97, 1
          %s453 = scalar_lea.sflag [#allocation4], %s452
          %s454 = sand.u32 %s97, 1
          %s455 = smul.addr %s454, 64
          %s456 = scalar_lea.vmem [#allocation5], %s455
          %458 = dma.done %s453, 1024
        $region48: #{tpu_custom_call.1} parent=43 // pred_fallthru
          _
      $region44: #{tpu_custom_call.1} parent=5 // pred_fallthru
        _
    $region6: #{tpu_custom_call.1} parent=1 // loop_footer
      %s19 = sadd.s32 1, %s15
    $region7: #{tpu_custom_call.1} parent=1 // loop_footer_branch
      %14 = sbr.rel target = $region3
    $region8: #{tpu_custom_call.1} parent=1 // loop_exit
      _
    %459 = vsyncpa [#allocation3], 1
    %s460 = scalar_lea.sflag [#allocation3], 1
    %461 = vsyncpa %s460, 1
    %462 = vsyncpa [#allocation4], 1
    %s463 = scalar_lea.sflag [#allocation4], 1
    %464 = vsyncpa %s463, 1

</llo_original>
